<compile_context>
chip_gen: v5e
topology: v5e:2x2
jax: 0.10.0
libtpu: 0.0.40
codegen_flags: <defaults>
</compile_context>

<pallas_src>
import functools

import jax
import jax.numpy as jnp
from jax.experimental import pallas as pl
from jax.experimental.pallas import tpu as pltpu


def highway_kernel(x_ref, w_ref, b_ref, o_ref, *, num_layers, matmul_dtype):
    """One row-tile of the full highway stack.

    x_ref : (TM, D)      f32 row tile (highway state stays f32 throughout)
    w_ref : (L, D, 2D)   fused [nonlinear | gate] weights, matmul dtype
    b_ref : (L, 1, 2D)   fused biases (gate half initialized to 1), f32
    o_ref : (TM, D)      f32 output row tile
    """
    d = x_ref.shape[-1]
    cur = x_ref[...]                                  # (TM, D) f32
    for l in range(num_layers):                       # static unroll; L is small
        proj = jnp.dot(cur.astype(matmul_dtype), w_ref[l],
                       preferred_element_type=jnp.float32) + b_ref[l]
        h = jnp.maximum(proj[:, :d], 0.0)             # relu path, f32
        g = jax.nn.sigmoid(proj[:, d:])               # gate, f32 (EUP)
        cur = g * cur + (1.0 - g) * h                 # highway blend, f32
    o_ref[...] = cur


def _round_up(v, m):
    return -(-v // m) * m


@functools.partial(jax.jit, static_argnames=("tile_m", "matmul_dtype"))
def highway_forward(x, w, b, *, tile_m=512, matmul_dtype=jnp.bfloat16):
    """Fused highway stack.

    x: (..., D) float.
    w: (L, D, 2D) fused weights = transposed PyTorch Linear weight; columns
       [:D] feed the relu path, [D:] the gate (matches torch.chunk(2, -1)).
    b: (L, 2D) fused biases (b[:, D:] initialized to 1).
    Returns (..., D) float32.
    """
    D = x.shape[-1]
    L, d_in, two_d = w.shape
    assert d_in == D and two_d == 2 * D
    lead = x.shape[:-1]

    x2d = x.reshape(-1, D).astype(jnp.float32)
    n = x2d.shape[0]

    # Row tile: as large as requested, but no larger than the (8-rounded) row
    # count; always a multiple of 8 (f32 sublane granularity).
    tm = _round_up(max(8, min(tile_m, _round_up(n, 8))), 8)
    grid = (pl.cdiv(n, tm),)          # ragged last tile handled by Pallas

    w_k = w.astype(matmul_dtype)      # bf16 weights in HBM: half the DMA bytes
    b_k = b.reshape(L, 1, two_d).astype(jnp.float32)

    # Rough VMEM budget: double-buffer-allocated weights/biases (grid-invariant,
    # so no re-DMA across steps) + double-buffered in/out row tiles + a few
    # (TM, 2D) f32 temporaries for the unrolled body.
    est = (2 * L * D * two_d * jnp.dtype(matmul_dtype).itemsize
           + 2 * L * 8 * _round_up(two_d, 128) * 4
           + 2 * 2 * tm * _round_up(D, 128) * 4
           + 6 * tm * _round_up(two_d, 128) * 4)
    vmem_limit = None
    if est > 16 * 1024 * 1024:        # only override when default may be short
        vmem_limit = int(min(96 * 1024 * 1024, _round_up(est, 1 << 20)))

    kernel = functools.partial(
        highway_kernel, num_layers=L, matmul_dtype=matmul_dtype)

    out = pl.pallas_call(
        kernel,
        out_shape=jax.ShapeDtypeStruct((n, D), jnp.float32),
        grid_spec=pltpu.PrefetchScalarGridSpec(
            num_scalar_prefetch=0,
            grid=grid,
            in_specs=[
                pl.BlockSpec((tm, D), lambda i: (i, 0)),           # row tile
                pl.BlockSpec((L, D, two_d), lambda i: (0, 0, 0)),  # fused weights
                pl.BlockSpec((L, 1, two_d), lambda i: (0, 0, 0)),  # fused biases
            ],
            out_specs=pl.BlockSpec((tm, D), lambda i: (i, 0)),
        ),
        compiler_params=pltpu.CompilerParams(
            dimension_semantics=("parallel",),   # rows shard across v7x's 2 TCs
            vmem_limit_bytes=vmem_limit,
        ),
    )(x2d, w_k, b_k)

    return out.reshape(*lead, D)


def highway_reference(x, w, b):
    """Pure-JAX reference mirroring the PyTorch forward."""
    D = x.shape[-1]
    cur = x.astype(jnp.float32)
    for l in range(w.shape[0]):
        proj = cur @ w[l] + b[l]
        h = jnp.maximum(proj[..., :D], 0.0)
        g = jax.nn.sigmoid(proj[..., D:])
        cur = g * cur + (1.0 - g) * h
    return cur


if __name__ == "__main__":
    # Shapes consistent with Highway(input_dim=32, num_layers=2) applied to a
    # (batch, seq, input_dim) = (2, 8, 32) input.
    # NOTE: in real deployments D should be a multiple of 128 so the lane axis
    # is dense and output stores are unmasked; the kernel works for any D.
    batch, seq, D, L = 2, 8, 32, 2

    key = jax.random.PRNGKey(0)
    kx, kw, kb, kx2 = jax.random.split(key, 4)

    x = jax.random.normal(kx, (batch, seq, D), dtype=jnp.float32)

    # PyTorch nn.Linear(D, 2D) init: U(-1/sqrt(D), 1/sqrt(D)) for weight/bias,
    # then the gate half of the bias is filled with 1.  Stored pre-transposed
    # as (L, D, 2D) so the kernel computes x @ W directly.
    bound = 1.0 / float(D) ** 0.5
    w = jax.random.uniform(kw, (L, D, 2 * D), jnp.float32, -bound, bound)
    b = jax.random.uniform(kb, (L, 2 * D), jnp.float32, -bound, bound)
    b = b.at[:, D:].set(1.0)

    ref = highway_reference(x, w, b)

    # f32 MXU path: tight check against the reference.
    out_f32 = jax.block_until_ready(
        highway_forward(x, w, b, matmul_dtype=jnp.float32))
    assert out_f32.shape == x.shape
    assert jnp.allclose(out_f32, ref, atol=1e-4, rtol=1e-4), "f32 kernel mismatch"

    # Default bf16-MXU / f32-accumulate path (perf configuration).
    out_bf16 = jax.block_until_ready(highway_forward(x, w, b))
    assert out_bf16.shape == x.shape
    assert jnp.allclose(out_bf16, ref, atol=2e-2, rtol=2e-2), "bf16 kernel mismatch"

    # Multi-tile + ragged-last-tile exercise: 400 rows with tile_m=128 -> grid 4.
    x2 = jax.random.normal(kx2, (4, 100, D), dtype=jnp.float32)
    out2 = jax.block_until_ready(highway_forward(x2, w, b, tile_m=128))
    ref2 = highway_reference(x2, w, b)
    assert jnp.allclose(out2, ref2, atol=2e-2, rtol=2e-2), "ragged-tile mismatch"

    print("KERNEL_OK")
</pallas_src>

<mosaic_0001>
module attributes {stable_mosaic.version = 11 : i64} {
  func.func @highway_kernel(%arg0: i32, %arg1: memref<16x32xf32, #tpu.memory_space<vmem>>, %arg2: memref<2x32x64xf32, #tpu.memory_space<vmem>>, %arg3: memref<2x1x64xf32, #tpu.memory_space<vmem>>, %arg4: memref<16x32xf32, #tpu.memory_space<vmem>>) attributes {dimension_semantics = [#tpu.dimension_semantics<parallel>], iteration_bounds = array<i64: 1>, scalar_prefetch = 0 : i64, scratch_operands = 0 : i64, tpu.core_type = #tpu.core_type<tc>, window_params = [{transform_indices = @transform_0, window_bounds = array<i64: 16, 32>}, {pipeline_mode = #tpu.pipeline_mode<synchronous>, transform_indices = @transform_1, window_bounds = array<i64: 2, 32, 64>}, {pipeline_mode = #tpu.pipeline_mode<synchronous>, transform_indices = @transform_2, window_bounds = array<i64: 2, 1, 64>}, {transform_indices = @transform_3, window_bounds = array<i64: 16, 32>}]} {
    %c0 = arith.constant 0 : index
    %c0_0 = arith.constant 0 : index
    %0 = vector.load %arg1[%c0, %c0_0] : memref<16x32xf32, #tpu.memory_space<vmem>>, vector<16x32xf32>
    %c0_1 = arith.constant 0 : index
    %c0_2 = arith.constant 0 : index
    %c0_3 = arith.constant 0 : index
    %1 = vector.load %arg2[%c0_1, %c0_2, %c0_3] : memref<2x32x64xf32, #tpu.memory_space<vmem>>, vector<1x32x64xf32>
    %2 = vector.shape_cast %1 : vector<1x32x64xf32> to vector<32x64xf32>
    %cst = arith.constant dense<0.000000e+00> : vector<16x64xf32>
    %3 = tpu.matmul %0, %2, %cst {dimension_numbers = #tpu.dot_dimension_numbers<[1], [0], [0], [1], [0, 0, 1, 1], [], []>} : vector<16x32xf32>, vector<32x64xf32>, vector<16x64xf32> -> vector<16x64xf32>
    %c0_4 = arith.constant 0 : index
    %c0_5 = arith.constant 0 : index
    %c0_6 = arith.constant 0 : index
    %4 = vector.load %arg3[%c0_4, %c0_5, %c0_6] : memref<2x1x64xf32, #tpu.memory_space<vmem>>, vector<1x1x64xf32>
    %5 = vector.shape_cast %4 : vector<1x1x64xf32> to vector<1x64xf32>
    %6 = vector.broadcast %5 : vector<1x64xf32> to vector<16x64xf32>
    %7 = arith.addf %3, %6 : vector<16x64xf32>
    %8 = vector.extract_strided_slice %7 {offsets = [0, 0], sizes = [16, 32], strides = [1, 1]} : vector<16x64xf32> to vector<16x32xf32>
    %cst_7 = arith.constant 0.000000e+00 : f32
    %9 = vector.broadcast %cst_7 : f32 to vector<16x32xf32>
    %10 = arith.maximumf %8, %9 : vector<16x32xf32>
    %11 = vector.extract_strided_slice %7 {offsets = [0, 32], sizes = [16, 32], strides = [1, 1]} : vector<16x64xf32> to vector<16x32xf32>
    %12 = arith.negf %11 : vector<16x32xf32>
    %13 = math.exp %12 : vector<16x32xf32>
    %cst_8 = arith.constant 1.000000e+00 : f32
    %14 = vector.broadcast %cst_8 : f32 to vector<16x32xf32>
    %15 = arith.addf %14, %13 : vector<16x32xf32>
    %16 = arith.divf %14, %15 : vector<16x32xf32>
    %17 = arith.mulf %16, %0 : vector<16x32xf32>
    %cst_9 = arith.constant 1.000000e+00 : f32
    %18 = vector.broadcast %cst_9 : f32 to vector<16x32xf32>
    %19 = arith.subf %18, %16 : vector<16x32xf32>
    %20 = arith.mulf %19, %10 : vector<16x32xf32>
    %21 = arith.addf %17, %20 : vector<16x32xf32>
    %c1 = arith.constant 1 : index
    %c0_10 = arith.constant 0 : index
    %c0_11 = arith.constant 0 : index
    %22 = vector.load %arg2[%c1, %c0_10, %c0_11] : memref<2x32x64xf32, #tpu.memory_space<vmem>>, vector<1x32x64xf32>
    %23 = vector.shape_cast %22 : vector<1x32x64xf32> to vector<32x64xf32>
    %cst_12 = arith.constant dense<0.000000e+00> : vector<16x64xf32>
    %24 = tpu.matmul %21, %23, %cst_12 {dimension_numbers = #tpu.dot_dimension_numbers<[1], [0], [0], [1], [0, 0, 1, 1], [], []>} : vector<16x32xf32>, vector<32x64xf32>, vector<16x64xf32> -> vector<16x64xf32>
    %c1_13 = arith.constant 1 : index
    %c0_14 = arith.constant 0 : index
    %c0_15 = arith.constant 0 : index
    %25 = vector.load %arg3[%c1_13, %c0_14, %c0_15] : memref<2x1x64xf32, #tpu.memory_space<vmem>>, vector<1x1x64xf32>
    %26 = vector.shape_cast %25 : vector<1x1x64xf32> to vector<1x64xf32>
    %27 = vector.broadcast %26 : vector<1x64xf32> to vector<16x64xf32>
    %28 = arith.addf %24, %27 : vector<16x64xf32>
    %29 = vector.extract_strided_slice %28 {offsets = [0, 0], sizes = [16, 32], strides = [1, 1]} : vector<16x64xf32> to vector<16x32xf32>
    %cst_16 = arith.constant 0.000000e+00 : f32
    %30 = vector.broadcast %cst_16 : f32 to vector<16x32xf32>
    %31 = arith.maximumf %29, %30 : vector<16x32xf32>
    %32 = vector.extract_strided_slice %28 {offsets = [0, 32], sizes = [16, 32], strides = [1, 1]} : vector<16x64xf32> to vector<16x32xf32>
    %33 = arith.negf %32 : vector<16x32xf32>
    %34 = math.exp %33 : vector<16x32xf32>
    %cst_17 = arith.constant 1.000000e+00 : f32
    %35 = vector.broadcast %cst_17 : f32 to vector<16x32xf32>
    %36 = arith.addf %35, %34 : vector<16x32xf32>
    %37 = arith.divf %35, %36 : vector<16x32xf32>
    %38 = arith.mulf %37, %21 : vector<16x32xf32>
    %cst_18 = arith.constant 1.000000e+00 : f32
    %39 = vector.broadcast %cst_18 : f32 to vector<16x32xf32>
    %40 = arith.subf %39, %37 : vector<16x32xf32>
    %41 = arith.mulf %40, %31 : vector<16x32xf32>
    %42 = arith.addf %38, %41 : vector<16x32xf32>
    %c0_19 = arith.constant 0 : index
    %c0_20 = arith.constant 0 : index
    %43 = vector.load %arg4[%c0_19, %c0_20] : memref<16x32xf32, #tpu.memory_space<vmem>>, vector<16x32xf32>
    tpu.vector_store %arg4[%c0_19, %c0_20], %42 {strides = array<i32>} : memref<16x32xf32, #tpu.memory_space<vmem>>, vector<16x32xf32>,
    return
  }
  func.func @transform_0(%arg0: i32) -> (i32, i32) {
    %c0_i32 = arith.constant 0 : i32
    %c0_i32_0 = arith.constant 0 : i32
    return %arg0, %c0_i32 : i32, i32
  }
  func.func @transform_1(%arg0: i32) -> (i32, i32, i32) {
    %c0_i32 = arith.constant 0 : i32
    %c0_i32_0 = arith.constant 0 : i32
    %c0_i32_1 = arith.constant 0 : i32
    %c0_i32_2 = arith.constant 0 : i32
    return %c0_i32, %c0_i32_0, %c0_i32_1 : i32, i32, i32
  }
  func.func @transform_2(%arg0: i32) -> (i32, i32, i32) {
    %c0_i32 = arith.constant 0 : i32
    %c0_i32_0 = arith.constant 0 : i32
    %c0_i32_1 = arith.constant 0 : i32
    %c0_i32_2 = arith.constant 0 : i32
    return %c0_i32, %c0_i32_0, %c0_i32_1 : i32, i32, i32
  }
  func.func @transform_3(%arg0: i32) -> (i32, i32) {
    %c0_i32 = arith.constant 0 : i32
    %c0_i32_0 = arith.constant 0 : i32
    return %arg0, %c0_i32 : i32, i32
  }
}

</mosaic_0001>

<llo_original>
// kernel: highway_forward.1
$region0: #{highway_forward.1}
  #allocation0 [shape = 'u32[]', space=smem, size = 0x4, offset = 0x4, fixed_abs, tag = 'smem constant byte address 0x4 - core index']
  #allocation1 [shape = 'u32[72,128]{1,0:T(1,128)}', space=vmem, size = 0x9000, scoped, tag = 'internal scratch']
  %s0 = inlined_call_operand.hbm [shape: f32[16,32], index: 0, kind: input, shape index: {}]
  %s1 = inlined_call_operand.hbm [shape: f32[2,32,64], index: 1, kind: input, shape index: {}]
  %s2 = inlined_call_operand.vmem [shape: f32[2,1,64], index: 2, kind: input, shape index: {}]
  %s3 = inlined_call_operand.hbm [shape: f32[16,32], index: 3, kind: output, shape index: {}]
  %s4 = sld [smem:[#allocation0]]
  $region30: #{highway_forward.1} parent=0
    _
  %s6 = ssub.s32 1, %s4
  %s7 = scalar_select 0, %s6, %s4
  $region1: #{highway_forward.1} parent=0
    #allocation2 [shape = 'u8[8192]{0}', space=vmem, size = 0x2000, scoped, tag = 'input window, operand 0, single buffered']
    #allocation3 [shape = 's32[1]{0}', space=sflag, size = 0x4, scoped, tag = 'scoped memory for highway_forward.1']
    #allocation4 [shape = 's32[1]{0}', space=sflag, size = 0x4, scoped, tag = 'scoped memory for highway_forward.1']
    #allocation5 [shape = 'u8[32768]{0}', space=vmem, size = 0x8000, scoped, tag = 'input window, operand 1, single buffered']
    #allocation6 [shape = 's32[1]{0}', space=sflag, size = 0x4, scoped, tag = 'scoped memory for highway_forward.1']
    #allocation7 [shape = 'u8[8192]{0}', space=vmem, size = 0x2000, scoped, tag = 'output window, operand 0, single buffered']
    %8 = vsyncpa [#allocation3], 0
    %9 = vsyncpa [#allocation6], 0
    %10 = vsyncpa [#allocation4], 0
    // Predicated region
    $region2: #{highway_forward.1} parent=1 // pred_check
      _
    $region3: #{highway_forward.1} parent=1 // pred_check_branch
      %12 = sbr.rel (0) target = $region5
    $region4: #{highway_forward.1} parent=1 // pred_region
      %14 = vsyncadd [#allocation3], 0
      %s15 = sshll.u32 %s0, 4
      %s16 = int_to_ptr.hbm [resolvable:$true] %s15
      %s17 = sshll.u32 [#allocation2], 4
      %s18 = int_to_ptr.vmem [resolvable:$true] %s17
      %23 = dma.hbm_to_vmem [thread:$0]  %s16, 256, %s18, [#allocation3], 128, 128, 8
    $region5: #{highway_forward.1} parent=1 // pred_fallthru
      _
    // Predicated region
    $region6: #{highway_forward.1} parent=1 // pred_check
      _
    $region7: #{highway_forward.1} parent=1 // pred_check_branch
      %25 = sbr.rel (0) target = $region9
    $region8: #{highway_forward.1} parent=1 // pred_region
      %27 = vsyncadd [#allocation6], 0
      %s28 = sshll.u32 %s1, 4
      %s29 = int_to_ptr.hbm [resolvable:$true] %s28
      %s30 = sshll.u32 [#allocation5], 4
      %s31 = int_to_ptr.vmem [resolvable:$true] %s30
      %36 = dma.hbm_to_vmem [thread:$0]  %s29, 1024, %s31, [#allocation6], 128, 128, 8
    $region9: #{highway_forward.1} parent=1 // pred_fallthru
      _
    // Predicated region
    $region10: #{highway_forward.1} parent=1 // pred_check
      _
    $region11: #{highway_forward.1} parent=1 // pred_check_branch
      %38 = sbr.rel (0) target = $region13
    $region12: #{highway_forward.1} parent=1 // pred_region
      _
    $region13: #{highway_forward.1} parent=1 // pred_fallthru
      _
    // Predicated region
    $region14: #{highway_forward.1} parent=1 // pred_check
      _
    $region15: #{highway_forward.1} parent=1 // pred_check_branch
      %40 = sbr.rel (0) target = $region17
    $region16: #{highway_forward.1} parent=1 // pred_region
      %42 = dma.done [#allocation3], 256
    $region17: #{highway_forward.1} parent=1 // pred_fallthru
      _
    // Predicated region
    $region18: #{highway_forward.1} parent=1 // pred_check
      _
    $region19: #{highway_forward.1} parent=1 // pred_check_branch
      %44 = sbr.rel (0) target = $region21
    $region20: #{highway_forward.1} parent=1 // pred_region
      %46 = dma.done [#allocation6], 1024
    $region21: #{highway_forward.1} parent=1 // pred_fallthru
      _
    %v47 = vld [vmem:[#allocation2] sm:$0xff]
    %v48 = vld [vmem:[#allocation2 + $0x8] sm:$0xff]
    %v49 = vld [vmem:[#allocation5] sm:$0xff]
    %v50 = vld [vmem:[#allocation5 + $0x8] sm:$0xff]
    %v51 = vld [vmem:[#allocation5 + $0x10] sm:$0xff]
    %v52 = vld [vmem:[#allocation5 + $0x18] sm:$0xff]
    %v53 = vld [vmem:[%s2] sm:$0x1]
    %v55 = vperm.slane %v53, 0
    %vm57 = vcmask 261120
    %v59 = vsel %vm57, %v47, 0
    %v62 = vsel %vm57, %v48, 0
    %64 = vmatpush.msra.mxu0 0.0
    %65 = vmatpush.msra.mxu0 0.0
    %66 = vmatpush.msra.mxu0 0.0
    %67 = vmatpush.msra.mxu0 0.0
    %68 = vmatpush.msra.mxu0 0.0
    %69 = vmatpush.msra.mxu0 0.0
    %70 = vmatpush.msra.mxu0 0.0
    %71 = vmatpush.msra.mxu0 0.0
    %72 = vmatpush.msra.mxu0 0.0
    %73 = vmatpush.msra.mxu0 0.0
    %74 = vmatpush.msra.mxu0 0.0
    %75 = vmatpush.msra.mxu0 0.0
    %76 = vmatpush.msra.mxu0 %v52
    %77 = vmatpush.msra.mxu0 %v51
    %78 = vmatpush.msra.mxu0 %v50
    %79 = vmatpush.msra.mxu0 %v49
    %80 = vmatmul.f32.gmra.mxu0 %v59
    %v81 = vpop.f32.mrf.mxu0
    %v82 = vadd.f32 %v55, %v81
    %83 = vmatmul.f32.gmra.mxu0 %v62
    %v84 = vpop.f32.mrf.mxu0
    %v85 = vadd.f32 %v55, %v84
    %86 = vdwg.mxu0
    %v87 = vmax.f32 %v82, 0.0
    %v88 = vmax.f32 %v85, 0.0
    %v89 = vxor.u32 %v82, 2147483648
    %v90 = vxor.u32 %v85, 2147483648
    %v91 = vmul.f32 %v89, 1.442695
    %v92 = vpow.pop %v91
    %v93 = vmul.f32 %v90, 1.442695
    %v94 = vpow.pop %v93
    %v95 = vadd.f32 %v92, 1.0
    %v96 = vadd.f32 %v94, 1.0
    %v97 = vrcp.pop %v95
    %v98 = vmul.f32 %v95, %v97
    %v99 = vsub.f32 1.0, %v98
    %v100 = vmul.f32 %v97, %v99
    %v101 = vadd.f32 %v97, %v100
    %vm102 = vweird.f32 %v95
    %vm103 = vweird.f32 %v97
    %vm104 = vmor %vm102, %vm103
    %v105 = vsel %vm104, %v97, %v101
    %v106 = vand.u32 2147483647, %v95
    %vm107 = vcmp.eq.f32.partialorder %v106, 8.507059e+37
    %v108 = vand.u32 %v95, 2147483648
    %v109 = vor.u32 1.1754944e-38, %v108
    %v110 = vsel %vm107, %v109, %v105
    %v111 = vmul.f32 1.0, %v110
    %v112 = vrcp.pop %v96
    %v113 = vmul.f32 %v96, %v112
    %v114 = vsub.f32 1.0, %v113
    %v115 = vmul.f32 %v112, %v114
    %v116 = vadd.f32 %v112, %v115
    %vm117 = vweird.f32 %v96
    %vm118 = vweird.f32 %v112
    %vm119 = vmor %vm117, %vm118
    %v120 = vsel %vm119, %v112, %v116
    %v121 = vand.u32 2147483647, %v96
    %vm122 = vcmp.eq.f32.partialorder %v121, 8.507059e+37
    %v123 = vand.u32 %v96, 2147483648
    %v124 = vor.u32 1.1754944e-38, %v123
    %v125 = vsel %vm122, %v124, %v120
    %v126 = vmul.f32 1.0, %v125
    %127 = vrot.lane.b32.xlu0 %v47, 32
    %v128 = vpop.permute.xlu0 %127
    %129 = vrot.lane.b32.xlu0 %v48, 32
    %v130 = vpop.permute.xlu0 %129
    %v133 = vmul.f32 %v111, %v128
    %v134 = vmul.f32 %v126, %v130
    %v135 = vsub.f32 1.0, %v111
    %v136 = vsub.f32 1.0, %v126
    %139 = vrot.lane.b32.xlu0 %v87, 32
    %v140 = vpop.permute.xlu0 %139
    %141 = vrot.lane.b32.xlu0 %v88, 32
    %v142 = vpop.permute.xlu0 %141
    %v145 = vmul.f32 %v135, %v140
    %v146 = vmul.f32 %v136, %v142
    %v147 = vadd.f32 %v133, %v145
    %v148 = vadd.f32 %v134, %v146
    %s149 = scalar_lea.vmem [#allocation5], 32
    %v150 = vld [vmem:[%s149] sm:$0xff]
    %v151 = vld [vmem:[%s149 + $0x8] sm:$0xff]
    %v152 = vld [vmem:[%s149 + $0x10] sm:$0xff]
    %v153 = vld [vmem:[%s149 + $0x18] sm:$0xff]
    %s154 = scalar_lea.vmem %s2, 1
    %v155 = vld [vmem:[%s154] sm:$0x1]
    %v157 = vperm.slane %v155, 0
    %161 = vrot.lane.b32.xlu0 %v147, 96
    %v162 = vpop.permute.xlu0 %161
    %163 = vrot.lane.b32.xlu0 %v148, 96
    %v164 = vpop.permute.xlu0 %163
    %v165 = vsel %vm57, %v162, 0
    %v167 = vsel %vm57, %v164, 0
    %169 = vmatpush.msra.mxu0 0.0
    %170 = vmatpush.msra.mxu0 0.0
    %171 = vmatpush.msra.mxu0 0.0
    %172 = vmatpush.msra.mxu0 0.0
    %173 = vmatpush.msra.mxu0 0.0
    %174 = vmatpush.msra.mxu0 0.0
    %175 = vmatpush.msra.mxu0 0.0
    %176 = vmatpush.msra.mxu0 0.0
    %177 = vmatpush.msra.mxu0 0.0
    %178 = vmatpush.msra.mxu0 0.0
    %179 = vmatpush.msra.mxu0 0.0
    %180 = vmatpush.msra.mxu0 0.0
    %181 = vmatpush.msra.mxu0 %v153
    %182 = vmatpush.msra.mxu0 %v152
    %183 = vmatpush.msra.mxu0 %v151
    %184 = vmatpush.msra.mxu0 %v150
    %185 = vmatmul.f32.gmra.mxu0 %v165
    %v186 = vpop.f32.mrf.mxu0
    %v187 = vadd.f32 %v157, %v186
    %188 = vmatmul.f32.gmra.mxu0 %v167
    %v189 = vpop.f32.mrf.mxu0
    %v190 = vadd.f32 %v157, %v189
    %191 = vdwg.mxu0
    %v192 = vmax.f32 %v187, 0.0
    %v193 = vmax.f32 %v190, 0.0
    %v194 = vxor.u32 %v187, 2147483648
    %v195 = vxor.u32 %v190, 2147483648
    %v196 = vmul.f32 %v194, 1.442695
    %v197 = vpow.pop %v196
    %v198 = vmul.f32 %v195, 1.442695
    %v199 = vpow.pop %v198
    %v200 = vadd.f32 %v197, 1.0
    %v201 = vadd.f32 %v199, 1.0
    %v202 = vrcp.pop %v200
    %v203 = vmul.f32 %v200, %v202
    %v204 = vsub.f32 1.0, %v203
    %v205 = vmul.f32 %v202, %v204
    %v206 = vadd.f32 %v202, %v205
    %vm207 = vweird.f32 %v200
    %vm208 = vweird.f32 %v202
    %vm209 = vmor %vm207, %vm208
    %v210 = vsel %vm209, %v202, %v206
    %v211 = vand.u32 2147483647, %v200
    %vm212 = vcmp.eq.f32.partialorder %v211, 8.507059e+37
    %v213 = vand.u32 %v200, 2147483648
    %v214 = vor.u32 1.1754944e-38, %v213
    %v215 = vsel %vm212, %v214, %v210
    %v216 = vmul.f32 1.0, %v215
    %v217 = vrcp.pop %v201
    %v218 = vmul.f32 %v201, %v217
    %v219 = vsub.f32 1.0, %v218
    %v220 = vmul.f32 %v217, %v219
    %v221 = vadd.f32 %v217, %v220
    %vm222 = vweird.f32 %v201
    %vm223 = vweird.f32 %v217
    %vm224 = vmor %vm222, %vm223
    %v225 = vsel %vm224, %v217, %v221
    %v226 = vand.u32 2147483647, %v201
    %vm227 = vcmp.eq.f32.partialorder %v226, 8.507059e+37
    %v228 = vand.u32 %v201, 2147483648
    %v229 = vor.u32 1.1754944e-38, %v228
    %v230 = vsel %vm227, %v229, %v225
    %v231 = vmul.f32 1.0, %v230
    %v232 = vmul.f32 %v216, %v147
    %v233 = vmul.f32 %v231, %v148
    %v234 = vsub.f32 1.0, %v216
    %v235 = vsub.f32 1.0, %v231
    %238 = vrot.lane.b32.xlu0 %v192, 32
    %v239 = vpop.permute.xlu0 %238
    %240 = vrot.lane.b32.xlu0 %v193, 32
    %v241 = vpop.permute.xlu0 %240
    %v244 = vmul.f32 %v234, %v239
    %v245 = vmul.f32 %v235, %v241
    %v246 = vadd.f32 %v232, %v244
    %v247 = vadd.f32 %v233, %v245
    %250 = vrot.lane.b32.xlu0 %v246, 96
    %v251 = vpop.permute.xlu0 %250
    %252 = vrot.lane.b32.xlu0 %v247, 96
    %v253 = vpop.permute.xlu0 %252
    %256 = vst.msk [vmem:[#allocation7] sm:$0xff] %vm57, %v251
    %257 = vst.msk [vmem:[#allocation7 + $0x8] sm:$0xff] %vm57, %v253
    // Predicated region
    $region22: #{highway_forward.1} parent=1 // pred_check
      _
    $region23: #{highway_forward.1} parent=1 // pred_check_branch
      %259 = sbr.rel (0) target = $region25
    $region24: #{highway_forward.1} parent=1 // pred_region
      %261 = vsyncadd [#allocation4], 0
      %s262 = sshll.u32 [#allocation7], 4
      %s263 = int_to_ptr.vmem [resolvable:$true] %s262
      %s264 = sshll.u32 %s3, 4
      %s265 = int_to_ptr.hbm [resolvable:$true] %s264
      %270 = dma.vmem_to_hbm [thread:$0]  %s263, 256, %s265, [#allocation4], 128, 128, 8
    $region25: #{highway_forward.1} parent=1 // pred_fallthru
      _
    // Predicated region
    $region26: #{highway_forward.1} parent=1 // pred_check
      _
    $region27: #{highway_forward.1} parent=1 // pred_check_branch
      %272 = sbr.rel (0) target = $region29
    $region28: #{highway_forward.1} parent=1 // pred_region
      %274 = dma.done [#allocation4], 256
    $region29: #{highway_forward.1} parent=1 // pred_fallthru
      _
    %275 = vsyncpa [#allocation3], 1
    %276 = vsyncpa [#allocation6], 1
    %277 = vsyncpa [#allocation4], 1

</llo_original>
